<compile_context>
chip_gen: v5e
topology: v5e:2x2
jax: 0.10.0
libtpu: 0.0.40
codegen_flags: <defaults>
</compile_context>

<pallas_src>
import functools

import jax
import jax.numpy as jnp
from jax import lax
from jax.experimental import pallas as pl
from jax.experimental.pallas import tpu as pltpu


def _round_up(x, m):
    return ((x + m - 1) // m) * m


def _gibbs_kernel(pv_ref, w_ref, b_ref, c_ref, uv_ref, uh_ref,
                  out_v_ref, out_h_ref, *, k):
    # beta is already folded into W / b / c by the wrapper.
    W = w_ref[...]                 # (Hp, Vp)  bf16, beta-scaled weights
    b = b_ref[...]                 # (1,  Vp)  f32,  beta-scaled visible bias
    c = c_ref[...]                 # (1,  Hp)  f32,  beta-scaled hidden bias

    # v @ W.T as a transposed contraction: contract dim 1 of v with dim 1 of W.
    dn_vWT = (((1,), (1,)), ((), ()))

    def rbm_forward(v_bits):       # (TM, Vp) {0,1} bf16 -> hidden probabilities
        return jax.nn.sigmoid(
            lax.dot_general(v_bits, W, dn_vWT,
                            preferred_element_type=jnp.float32) + c)

    def rbm_generate(h_bits):      # (TM, Hp) {0,1} bf16 -> visible probabilities
        return jax.nn.sigmoid(
            jnp.dot(h_bits, W, preferred_element_type=jnp.float32) + b)

    prob_v = pv_ref[...]           # (TM, Vp) persistent chain probabilities, f32

    # prob_hk = model.forward(prob_vk.bernoulli(), scale=beta)
    v0 = (uv_ref[0] < prob_v).astype(jnp.bfloat16)
    prob_h = rbm_forward(v0)

    def body(i, carry):
        pv, ph = carry
        # prob_vk = model.generate(prob_hk.bernoulli(), scale=beta)
        h = (uh_ref[i] < ph).astype(jnp.bfloat16)
        pv = rbm_generate(h)
        # prob_hk = model.forward(prob_vk.bernoulli(), scale=beta)
        v = (uv_ref[i + 1] < pv).astype(jnp.bfloat16)
        ph = rbm_forward(v)
        return pv, ph

    if k > 0:
        prob_v, prob_h = lax.fori_loop(
            0, k, body, (prob_v, prob_h),
            unroll=True if k <= 4 else 2)

    out_v_ref[...] = prob_v
    out_h_ref[...] = prob_h


def persistent_gibbs_step(prob_v, W, b, c, key, *, beta=1.0, k=1, tile_m=None):
    """Runs the PersistentGibbsNetworkSampler hot loop in one Pallas TPU kernel.

    Returns (prob_vk, prob_hk) for ALL chains; the caller slices [:num_samples]
    and keeps (prob_vk, prob_hk) as the new persistent state.
    """
    N, V = prob_v.shape
    H = W.shape[0]
    k = int(k)

    # Lane-pad V and H to multiples of 128, sublane-pad the chain count to 8.
    Vp = _round_up(V, 128)
    Hp = _round_up(H, 128)
    n8 = _round_up(max(N, 8), 8)
    if tile_m is None:
        tile_m = min(n8, 256)          # whole batch when small, 256 rows otherwise
    Np = _round_up(n8, tile_m)
    grid_m = Np // tile_m
    ku = max(k, 1)

    # Fold beta into the parameters; padded weights/biases are zero so the
    # padded units never influence the real ones (they're sliced off below).
    W_pad = jnp.zeros((Hp, Vp), jnp.float32)
    W_pad = W_pad.at[:H, :V].set(beta * W.astype(jnp.float32)).astype(jnp.bfloat16)
    b_pad = jnp.zeros((1, Vp), jnp.float32).at[0, :V].set(beta * b.astype(jnp.float32))
    c_pad = jnp.zeros((1, Hp), jnp.float32).at[0, :H].set(beta * c.astype(jnp.float32))
    pv_pad = jnp.full((Np, Vp), 0.5, jnp.float32).at[:N, :V].set(
        prob_v.astype(jnp.float32))

    # Uniform randoms for every bernoulli draw of the chain (k+1 visible-side
    # draws, k hidden-side draws), generated outside the kernel.
    kv, kh = jax.random.split(key)
    u_v = jax.random.uniform(kv, (k + 1, Np, Vp), dtype=jnp.float32)
    u_h = jax.random.uniform(kh, (ku, Np, Hp), dtype=jnp.float32)

    kernel = functools.partial(_gibbs_kernel, k=k)

    flops = 2 * (2 * k + 1) * Np * Vp * Hp
    transcendentals = (k + 1) * Np * Hp + k * Np * Vp
    bytes_accessed = (W_pad.size * 2 + (b_pad.size + c_pad.size) * 4
                      + pv_pad.size * 4 + (u_v.size + u_h.size) * 4
                      + Np * (Vp + Hp) * 4)

    out_v, out_h = pl.pallas_call(
        kernel,
        out_shape=(
            jax.ShapeDtypeStruct((Np, Vp), jnp.float32),
            jax.ShapeDtypeStruct((Np, Hp), jnp.float32),
        ),
        grid=(grid_m,),
        in_specs=[
            pl.BlockSpec((tile_m, Vp), lambda i: (i, 0)),            # chain probs
            pl.BlockSpec((Hp, Vp), lambda i: (0, 0)),                # W (single copy)
            pl.BlockSpec((1, Vp), lambda i: (0, 0)),                 # visible bias
            pl.BlockSpec((1, Hp), lambda i: (0, 0)),                 # hidden bias
            pl.BlockSpec((k + 1, tile_m, Vp), lambda i: (0, i, 0)),  # visible uniforms
            pl.BlockSpec((ku, tile_m, Hp), lambda i: (0, i, 0)),     # hidden uniforms
        ],
        out_specs=[
            pl.BlockSpec((tile_m, Vp), lambda i: (i, 0)),            # prob_vk
            pl.BlockSpec((tile_m, Hp), lambda i: (i, 0)),            # prob_hk
        ],
        compiler_params=pltpu.CompilerParams(
            dimension_semantics=("parallel",)),
        cost_estimate=pl.CostEstimate(
            flops=flops,
            transcendentals=transcendentals,
            bytes_accessed=bytes_accessed),
    )(pv_pad, W_pad, b_pad, c_pad, u_v, u_h)

    # Slice off lane/sublane padding.
    return out_v[:N, :V], out_h[:N, :H]


class PersistentGibbsNetworkSampler:
    """JAX/Pallas port of qaml's PersistentGibbsNetworkSampler (PCD sampler)."""

    def __init__(self, V, H, num_chains, beta=1.0, key=None):
        if key is None:
            key = jax.random.PRNGKey(0)
        kW, kb, kc, kv, self._key = jax.random.split(key, 5)
        # Deterministic synthetic RBM parameters (shapes per qaml's RBM).
        self.W = 0.1 * jax.random.normal(kW, (H, V), dtype=jnp.float32)
        self.b = 0.1 * jax.random.normal(kb, (V,), dtype=jnp.float32)
        self.c = 0.1 * jax.random.normal(kc, (H,), dtype=jnp.float32)
        self.beta = float(beta)
        # Persistent chains: torch.rand(num_chains, V)
        self.prob_v = jax.random.uniform(kv, (num_chains, V), dtype=jnp.float32)
        self.prob_h = jnp.full((H,), jnp.nan, dtype=jnp.float32)
        self._step = 0

    def forward(self, num_samples, k=1, init=None):
        prob_v0 = self.prob_v if init is None else init
        # Fresh, collision-free randomness per PCD step.
        step_key = jax.random.fold_in(self._key, self._step)
        prob_vk, prob_hk = persistent_gibbs_step(
            prob_v0, self.W, self.b, self.c, step_key,
            beta=self.beta, k=k)
        self._step += 1
        # Persist chain state (PCD).
        self.prob_v = prob_vk
        self.prob_h = prob_hk
        return prob_vk[:num_samples], prob_hk[:num_samples]

    __call__ = forward


if __name__ == "__main__":
    # Small RBM: V=128 visible units, H=64 hidden units, 8 persistent chains.
    V, H, num_chains = 128, 64, 8
    sampler = PersistentGibbsNetworkSampler(V, H, num_chains, beta=1.0,
                                            key=jax.random.PRNGKey(0))

    num_samples, k = 4, 2
    prob_vk, prob_hk = sampler(num_samples, k=k)
    jax.block_until_ready((prob_vk, prob_hk))

    assert prob_vk.shape == (num_samples, V)
    assert prob_hk.shape == (num_samples, H)
    assert sampler.prob_v.shape == (num_chains, V)
    assert sampler.prob_h.shape == (num_chains, H)
    assert bool(jnp.all(jnp.isfinite(prob_vk)))
    assert bool(jnp.all(jnp.isfinite(prob_hk)))
    assert bool(jnp.all((prob_vk >= 0.0) & (prob_vk <= 1.0)))
    assert bool(jnp.all((prob_hk >= 0.0) & (prob_hk <= 1.0)))

    print("KERNEL_OK")
</pallas_src>

<mosaic_0001>
module attributes {stable_mosaic.version = 11 : i64} {
  func.func @_gibbs_kernel(%arg0: i32, %arg1: memref<8x128xf32, #tpu.memory_space<vmem>>, %arg2: memref<128x128xbf16, #tpu.memory_space<vmem>>, %arg3: memref<1x128xf32, #tpu.memory_space<vmem>>, %arg4: memref<1x128xf32, #tpu.memory_space<vmem>>, %arg5: memref<3x8x128xf32, #tpu.memory_space<vmem>>, %arg6: memref<2x8x128xf32, #tpu.memory_space<vmem>>, %arg7: memref<8x128xf32, #tpu.memory_space<vmem>>, %arg8: memref<8x128xf32, #tpu.memory_space<vmem>>) attributes {dimension_semantics = [#tpu.dimension_semantics<parallel>], iteration_bounds = array<i64: 1>, scalar_prefetch = 0 : i64, scratch_operands = 0 : i64, tpu.core_type = #tpu.core_type<tc>, window_params = [{transform_indices = @transform_0, window_bounds = array<i64: 8, 128>}, {pipeline_mode = #tpu.pipeline_mode<synchronous>, transform_indices = @transform_1, window_bounds = array<i64: 128, 128>}, {pipeline_mode = #tpu.pipeline_mode<synchronous>, transform_indices = @transform_2, window_bounds = array<i64: 1, 128>}, {pipeline_mode = #tpu.pipeline_mode<synchronous>, transform_indices = @transform_3, window_bounds = array<i64: 1, 128>}, {transform_indices = @transform_4, window_bounds = array<i64: 3, 8, 128>}, {transform_indices = @transform_5, window_bounds = array<i64: 2, 8, 128>}, {transform_indices = @transform_6, window_bounds = array<i64: 8, 128>}, {transform_indices = @transform_7, window_bounds = array<i64: 8, 128>}]} {
    %c0 = arith.constant 0 : index
    %c0_0 = arith.constant 0 : index
    %0 = vector.load %arg2[%c0, %c0_0] : memref<128x128xbf16, #tpu.memory_space<vmem>>, vector<128x128xbf16>
    %c0_1 = arith.constant 0 : index
    %c0_2 = arith.constant 0 : index
    %1 = vector.load %arg3[%c0_1, %c0_2] : memref<1x128xf32, #tpu.memory_space<vmem>>, vector<1x128xf32>
    %c0_3 = arith.constant 0 : index
    %c0_4 = arith.constant 0 : index
    %2 = vector.load %arg4[%c0_3, %c0_4] : memref<1x128xf32, #tpu.memory_space<vmem>>, vector<1x128xf32>
    %c0_5 = arith.constant 0 : index
    %c0_6 = arith.constant 0 : index
    %3 = vector.load %arg1[%c0_5, %c0_6] : memref<8x128xf32, #tpu.memory_space<vmem>>, vector<8x128xf32>
    %c0_7 = arith.constant 0 : index
    %c0_8 = arith.constant 0 : index
    %c0_9 = arith.constant 0 : index
    %4 = vector.load %arg5[%c0_7, %c0_8, %c0_9] : memref<3x8x128xf32, #tpu.memory_space<vmem>>, vector<1x8x128xf32>
    %5 = vector.shape_cast %4 : vector<1x8x128xf32> to vector<8x128xf32>
    %6 = arith.cmpf olt, %5, %3 : vector<8x128xf32>
    %7 = arith.extui %6 : vector<8x128xi1> to vector<8x128xi32>
    %8 = arith.sitofp %7 : vector<8x128xi32> to vector<8x128xf32>
    %9 = arith.truncf %8 : vector<8x128xf32> to vector<8x128xbf16>
    %cst = arith.constant dense<0.000000e+00> : vector<8x128xf32>
    %10 = tpu.matmul %9, %0, %cst {dimension_numbers = #tpu.dot_dimension_numbers<[1], [1], [0], [0], [0, 0, 1, 0], [], []>} : vector<8x128xbf16>, vector<128x128xbf16>, vector<8x128xf32> -> vector<8x128xf32>
    %11 = vector.broadcast %2 : vector<1x128xf32> to vector<8x128xf32>
    %12 = arith.addf %10, %11 : vector<8x128xf32>
    %13 = arith.negf %12 : vector<8x128xf32>
    %14 = math.exp %13 : vector<8x128xf32>
    %cst_10 = arith.constant 1.000000e+00 : f32
    %15 = vector.broadcast %cst_10 : f32 to vector<8x128xf32>
    %16 = arith.addf %15, %14 : vector<8x128xf32>
    %17 = arith.divf %15, %16 : vector<8x128xf32>
    %c0_i32 = arith.constant 0 : i32
    %18 = arith.index_cast %c0_i32 : i32 to index
    %c0_11 = arith.constant 0 : index
    %c0_12 = arith.constant 0 : index
    %19 = vector.load %arg6[%18, %c0_11, %c0_12] : memref<2x8x128xf32, #tpu.memory_space<vmem>>, vector<1x8x128xf32>
    %20 = vector.shape_cast %19 : vector<1x8x128xf32> to vector<8x128xf32>
    %21 = arith.cmpf olt, %20, %17 : vector<8x128xf32>
    %22 = arith.extui %21 : vector<8x128xi1> to vector<8x128xi32>
    %23 = arith.sitofp %22 : vector<8x128xi32> to vector<8x128xf32>
    %24 = arith.truncf %23 : vector<8x128xf32> to vector<8x128xbf16>
    %cst_13 = arith.constant dense<0.000000e+00> : vector<8x128xf32>
    %25 = tpu.matmul %24, %0, %cst_13 {dimension_numbers = #tpu.dot_dimension_numbers<[1], [0], [0], [1], [0, 0, 1, 1], [], []>} : vector<8x128xbf16>, vector<128x128xbf16>, vector<8x128xf32> -> vector<8x128xf32>
    %26 = vector.broadcast %1 : vector<1x128xf32> to vector<8x128xf32>
    %27 = arith.addf %25, %26 : vector<8x128xf32>
    %28 = arith.negf %27 : vector<8x128xf32>
    %29 = math.exp %28 : vector<8x128xf32>
    %cst_14 = arith.constant 1.000000e+00 : f32
    %30 = vector.broadcast %cst_14 : f32 to vector<8x128xf32>
    %31 = arith.addf %30, %29 : vector<8x128xf32>
    %32 = arith.divf %30, %31 : vector<8x128xf32>
    %c1_i32 = arith.constant 1 : i32
    %33 = arith.addi %c0_i32, %c1_i32 : i32
    %34 = arith.index_cast %33 : i32 to index
    %c0_15 = arith.constant 0 : index
    %c0_16 = arith.constant 0 : index
    %35 = vector.load %arg5[%34, %c0_15, %c0_16] : memref<3x8x128xf32, #tpu.memory_space<vmem>>, vector<1x8x128xf32>
    %36 = vector.shape_cast %35 : vector<1x8x128xf32> to vector<8x128xf32>
    %37 = arith.cmpf olt, %36, %32 : vector<8x128xf32>
    %38 = arith.extui %37 : vector<8x128xi1> to vector<8x128xi32>
    %39 = arith.sitofp %38 : vector<8x128xi32> to vector<8x128xf32>
    %40 = arith.truncf %39 : vector<8x128xf32> to vector<8x128xbf16>
    %cst_17 = arith.constant dense<0.000000e+00> : vector<8x128xf32>
    %41 = tpu.matmul %40, %0, %cst_17 {dimension_numbers = #tpu.dot_dimension_numbers<[1], [1], [0], [0], [0, 0, 1, 0], [], []>} : vector<8x128xbf16>, vector<128x128xbf16>, vector<8x128xf32> -> vector<8x128xf32>
    %42 = vector.broadcast %2 : vector<1x128xf32> to vector<8x128xf32>
    %43 = arith.addf %41, %42 : vector<8x128xf32>
    %44 = arith.negf %43 : vector<8x128xf32>
    %45 = math.exp %44 : vector<8x128xf32>
    %cst_18 = arith.constant 1.000000e+00 : f32
    %46 = vector.broadcast %cst_18 : f32 to vector<8x128xf32>
    %47 = arith.addf %46, %45 : vector<8x128xf32>
    %48 = arith.divf %46, %47 : vector<8x128xf32>
    %c1_i32_19 = arith.constant 1 : i32
    %49 = arith.index_cast %c1_i32_19 : i32 to index
    %c0_20 = arith.constant 0 : index
    %c0_21 = arith.constant 0 : index
    %50 = vector.load %arg6[%49, %c0_20, %c0_21] : memref<2x8x128xf32, #tpu.memory_space<vmem>>, vector<1x8x128xf32>
    %51 = vector.shape_cast %50 : vector<1x8x128xf32> to vector<8x128xf32>
    %52 = arith.cmpf olt, %51, %48 : vector<8x128xf32>
    %53 = arith.extui %52 : vector<8x128xi1> to vector<8x128xi32>
    %54 = arith.sitofp %53 : vector<8x128xi32> to vector<8x128xf32>
    %55 = arith.truncf %54 : vector<8x128xf32> to vector<8x128xbf16>
    %cst_22 = arith.constant dense<0.000000e+00> : vector<8x128xf32>
    %56 = tpu.matmul %55, %0, %cst_22 {dimension_numbers = #tpu.dot_dimension_numbers<[1], [0], [0], [1], [0, 0, 1, 1], [], []>} : vector<8x128xbf16>, vector<128x128xbf16>, vector<8x128xf32> -> vector<8x128xf32>
    %57 = vector.broadcast %1 : vector<1x128xf32> to vector<8x128xf32>
    %58 = arith.addf %56, %57 : vector<8x128xf32>
    %59 = arith.negf %58 : vector<8x128xf32>
    %60 = math.exp %59 : vector<8x128xf32>
    %cst_23 = arith.constant 1.000000e+00 : f32
    %61 = vector.broadcast %cst_23 : f32 to vector<8x128xf32>
    %62 = arith.addf %61, %60 : vector<8x128xf32>
    %63 = arith.divf %61, %62 : vector<8x128xf32>
    %c1_i32_24 = arith.constant 1 : i32
    %64 = arith.addi %c1_i32_19, %c1_i32_24 : i32
    %65 = arith.index_cast %64 : i32 to index
    %c0_25 = arith.constant 0 : index
    %c0_26 = arith.constant 0 : index
    %66 = vector.load %arg5[%65, %c0_25, %c0_26] : memref<3x8x128xf32, #tpu.memory_space<vmem>>, vector<1x8x128xf32>
    %67 = vector.shape_cast %66 : vector<1x8x128xf32> to vector<8x128xf32>
    %68 = arith.cmpf olt, %67, %63 : vector<8x128xf32>
    %69 = arith.extui %68 : vector<8x128xi1> to vector<8x128xi32>
    %70 = arith.sitofp %69 : vector<8x128xi32> to vector<8x128xf32>
    %71 = arith.truncf %70 : vector<8x128xf32> to vector<8x128xbf16>
    %cst_27 = arith.constant dense<0.000000e+00> : vector<8x128xf32>
    %72 = tpu.matmul %71, %0, %cst_27 {dimension_numbers = #tpu.dot_dimension_numbers<[1], [1], [0], [0], [0, 0, 1, 0], [], []>} : vector<8x128xbf16>, vector<128x128xbf16>, vector<8x128xf32> -> vector<8x128xf32>
    %73 = vector.broadcast %2 : vector<1x128xf32> to vector<8x128xf32>
    %74 = arith.addf %72, %73 : vector<8x128xf32>
    %75 = arith.negf %74 : vector<8x128xf32>
    %76 = math.exp %75 : vector<8x128xf32>
    %cst_28 = arith.constant 1.000000e+00 : f32
    %77 = vector.broadcast %cst_28 : f32 to vector<8x128xf32>
    %78 = arith.addf %77, %76 : vector<8x128xf32>
    %79 = arith.divf %77, %78 : vector<8x128xf32>
    %c2_i32 = arith.constant 2 : i32
    %c0_29 = arith.constant 0 : index
    %c0_30 = arith.constant 0 : index
    %80 = vector.load %arg7[%c0_29, %c0_30] : memref<8x128xf32, #tpu.memory_space<vmem>>, vector<8x128xf32>
    tpu.vector_store %arg7[%c0_29, %c0_30], %63 {strides = array<i32>} : memref<8x128xf32, #tpu.memory_space<vmem>>, vector<8x128xf32>,
    %c0_31 = arith.constant 0 : index
    %c0_32 = arith.constant 0 : index
    %81 = vector.load %arg8[%c0_31, %c0_32] : memref<8x128xf32, #tpu.memory_space<vmem>>, vector<8x128xf32>
    tpu.vector_store %arg8[%c0_31, %c0_32], %79 {strides = array<i32>} : memref<8x128xf32, #tpu.memory_space<vmem>>, vector<8x128xf32>,
    return
  }
  func.func @transform_0(%arg0: i32) -> (i32, i32) {
    %c0_i32 = arith.constant 0 : i32
    %c0_i32_0 = arith.constant 0 : i32
    return %arg0, %c0_i32 : i32, i32
  }
  func.func @transform_1(%arg0: i32) -> (i32, i32) {
    %c0_i32 = arith.constant 0 : i32
    %c0_i32_0 = arith.constant 0 : i32
    %c0_i32_1 = arith.constant 0 : i32
    return %c0_i32, %c0_i32_0 : i32, i32
  }
  func.func @transform_2(%arg0: i32) -> (i32, i32) {
    %c0_i32 = arith.constant 0 : i32
    %c0_i32_0 = arith.constant 0 : i32
    %c0_i32_1 = arith.constant 0 : i32
    return %c0_i32, %c0_i32_0 : i32, i32
  }
  func.func @transform_3(%arg0: i32) -> (i32, i32) {
    %c0_i32 = arith.constant 0 : i32
    %c0_i32_0 = arith.constant 0 : i32
    %c0_i32_1 = arith.constant 0 : i32
    return %c0_i32, %c0_i32_0 : i32, i32
  }
  func.func @transform_4(%arg0: i32) -> (i32, i32, i32) {
    %c0_i32 = arith.constant 0 : i32
    %c0_i32_0 = arith.constant 0 : i32
    %c0_i32_1 = arith.constant 0 : i32
    return %c0_i32, %arg0, %c0_i32_0 : i32, i32, i32
  }
  func.func @transform_5(%arg0: i32) -> (i32, i32, i32) {
    %c0_i32 = arith.constant 0 : i32
    %c0_i32_0 = arith.constant 0 : i32
    %c0_i32_1 = arith.constant 0 : i32
    return %c0_i32, %arg0, %c0_i32_0 : i32, i32, i32
  }
  func.func @transform_6(%arg0: i32) -> (i32, i32) {
    %c0_i32 = arith.constant 0 : i32
    %c0_i32_0 = arith.constant 0 : i32
    return %arg0, %c0_i32 : i32, i32
  }
  func.func @transform_7(%arg0: i32) -> (i32, i32) {
    %c0_i32 = arith.constant 0 : i32
    %c0_i32_0 = arith.constant 0 : i32
    return %arg0, %c0_i32 : i32, i32
  }
}

</mosaic_0001>

<llo_original>
// kernel: tpu_custom_call.1
$region0: #{tpu_custom_call.1}
  #allocation0 [shape = 'u32[]', space=smem, size = 0x4, offset = 0x4, fixed_abs, tag = 'smem constant byte address 0x4 - core index']
  #allocation1 [shape = 'u32[72,128]{1,0:T(1,128)}', space=vmem, size = 0x9000, scoped, tag = 'internal scratch']
  %s0 = inlined_call_operand.hbm [shape: f32[8,128], index: 0, kind: input, shape index: {}]
  %s1 = inlined_call_operand.hbm [shape: bf16[128,128], index: 1, kind: input, shape index: {}]
  %s2 = inlined_call_operand.vmem [shape: f32[1,128], index: 2, kind: input, shape index: {}]
  %s3 = inlined_call_operand.vmem [shape: f32[1,128], index: 3, kind: input, shape index: {}]
  %s4 = inlined_call_operand.hbm [shape: f32[3,8,128], index: 4, kind: input, shape index: {}]
  %s5 = inlined_call_operand.hbm [shape: f32[2,8,128], index: 5, kind: input, shape index: {}]
  %s6 = inlined_call_operand.hbm [shape: f32[8,128], index: 6, kind: output, shape index: {0}]
  %s7 = inlined_call_operand.hbm [shape: f32[8,128], index: 7, kind: output, shape index: {1}]
  %8 = xla_tuple %s6, %s7
  %s9 = sld [smem:[#allocation0]]
  $region58: #{tpu_custom_call.1} parent=0
    _
  %s11 = ssub.s32 1, %s9
  %s12 = scalar_select 0, %s11, %s9
  $region1: #{tpu_custom_call.1} parent=0
    #allocation2 [shape = 'u8[4096]{0}', space=vmem, size = 0x1000, scoped, tag = 'input window, operand 0, single buffered']
    #allocation3 [shape = 's32[1]{0}', space=sflag, size = 0x4, scoped, tag = 'scoped memory for tpu_custom_call.1']
    #allocation4 [shape = 's32[1]{0}', space=sflag, size = 0x4, scoped, tag = 'scoped memory for tpu_custom_call.1']
    #allocation5 [shape = 'u8[32768]{0}', space=vmem, size = 0x8000, scoped, tag = 'input window, operand 1, single buffered']
    #allocation6 [shape = 's32[1]{0}', space=sflag, size = 0x4, scoped, tag = 'scoped memory for tpu_custom_call.1']
    #allocation7 [shape = 'u8[12288]{0}', space=vmem, size = 0x3000, scoped, tag = 'input window, operand 4, single buffered']
    #allocation8 [shape = 'u8[8192]{0}', space=vmem, size = 0x2000, scoped, tag = 'input window, operand 5, single buffered']
    #allocation9 [shape = 's32[1]{0}', space=sflag, size = 0x4, scoped, tag = 'scoped memory for tpu_custom_call.1']
    #allocation10 [shape = 'u8[4096]{0}', space=vmem, size = 0x1000, scoped, tag = 'output window, operand 0, single buffered']
    #allocation11 [shape = 'u8[4096]{0}', space=vmem, size = 0x1000, scoped, tag = 'output window, operand 1, single buffered']
    #allocation12 [shape = 's32[1]{0}', space=sflag, size = 0x4, scoped, tag = 'scoped memory for tpu_custom_call.1']
    %13 = vsyncpa [#allocation3], 0
    %14 = vsyncpa [#allocation6], 0
    %15 = vsyncpa [#allocation9], 0
    %16 = vsyncpa [#allocation4], 0
    %17 = vsyncpa [#allocation12], 0
    // Predicated region
    $region2: #{tpu_custom_call.1} parent=1 // pred_check
      _
    $region3: #{tpu_custom_call.1} parent=1 // pred_check_branch
      %19 = sbr.rel (0) target = $region5
    $region4: #{tpu_custom_call.1} parent=1 // pred_region
      %21 = vsyncadd [#allocation3], 0
      %s23 = sshll.u32 %s0, 4
      %s24 = int_to_ptr.hbm [resolvable:$true] %s23
      %s25 = sshll.u32 [#allocation2], 4
      %s26 = int_to_ptr.vmem [resolvable:$true] %s25
      %28 = dma.hbm_to_vmem [thread:$0]  %s24, 128, %s26, [#allocation3]
    $region5: #{tpu_custom_call.1} parent=1 // pred_fallthru
      _
    // Predicated region
    $region6: #{tpu_custom_call.1} parent=1 // pred_check
      _
    $region7: #{tpu_custom_call.1} parent=1 // pred_check_branch
      %30 = sbr.rel (0) target = $region9
    $region8: #{tpu_custom_call.1} parent=1 // pred_region
      %32 = vsyncadd [#allocation6], 0
      %s33 = sshll.u32 %s1, 4
      %s34 = int_to_ptr.hbm [resolvable:$true] %s33
      %s35 = sshll.u32 [#allocation5], 4
      %s36 = int_to_ptr.vmem [resolvable:$true] %s35
      %41 = dma.hbm_to_vmem [thread:$0]  %s34, 1024, %s36, [#allocation6], 64, 64, 4
    $region9: #{tpu_custom_call.1} parent=1 // pred_fallthru
      _
    // Predicated region
    $region10: #{tpu_custom_call.1} parent=1 // pred_check
      _
    $region11: #{tpu_custom_call.1} parent=1 // pred_check_branch
      %43 = sbr.rel (0) target = $region13
    $region12: #{tpu_custom_call.1} parent=1 // pred_region
      _
    $region13: #{tpu_custom_call.1} parent=1 // pred_fallthru
      _
    // Predicated region
    $region14: #{tpu_custom_call.1} parent=1 // pred_check
      _
    $region15: #{tpu_custom_call.1} parent=1 // pred_check_branch
      %45 = sbr.rel (0) target = $region17
    $region16: #{tpu_custom_call.1} parent=1 // pred_region
      _
    $region17: #{tpu_custom_call.1} parent=1 // pred_fallthru
      _
    // Predicated region
    $region18: #{tpu_custom_call.1} parent=1 // pred_check
      _
    $region19: #{tpu_custom_call.1} parent=1 // pred_check_branch
      %47 = sbr.rel (0) target = $region21
    $region20: #{tpu_custom_call.1} parent=1 // pred_region
      %49 = vsyncadd [#allocation6], 0
      %s50 = sshll.u32 %s4, 4
      %s51 = int_to_ptr.hbm [resolvable:$true] %s50
      %s52 = sshll.u32 [#allocation7], 4
      %s53 = int_to_ptr.vmem [resolvable:$true] %s52
      %58 = dma.hbm_to_vmem [thread:$0]  %s51, 384, %s53, [#allocation6], 128, 128, 8
    $region21: #{tpu_custom_call.1} parent=1 // pred_fallthru
      _
    // Predicated region
    $region22: #{tpu_custom_call.1} parent=1 // pred_check
      _
    $region23: #{tpu_custom_call.1} parent=1 // pred_check_branch
      %60 = sbr.rel (0) target = $region25
    $region24: #{tpu_custom_call.1} parent=1 // pred_region
      %62 = vsyncadd [#allocation9], 0
      %s63 = sshll.u32 %s5, 4
      %s64 = int_to_ptr.hbm [resolvable:$true] %s63
      %s65 = sshll.u32 [#allocation8], 4
      %s66 = int_to_ptr.vmem [resolvable:$true] %s65
      %71 = dma.hbm_to_vmem [thread:$0]  %s64, 256, %s66, [#allocation9], 128, 128, 8
    $region25: #{tpu_custom_call.1} parent=1 // pred_fallthru
      _
    // Predicated region
    $region26: #{tpu_custom_call.1} parent=1 // pred_check
      _
    $region27: #{tpu_custom_call.1} parent=1 // pred_check_branch
      %73 = sbr.rel (0) target = $region29
    $region28: #{tpu_custom_call.1} parent=1 // pred_region
      %75 = dma.done [#allocation3], 128
    $region29: #{tpu_custom_call.1} parent=1 // pred_fallthru
      _
    // Predicated region
    $region30: #{tpu_custom_call.1} parent=1 // pred_check
      _
    $region31: #{tpu_custom_call.1} parent=1 // pred_check_branch
      %77 = sbr.rel (0) target = $region33
    $region32: #{tpu_custom_call.1} parent=1 // pred_region
      %79 = dma.done [#allocation6], 1024
    $region33: #{tpu_custom_call.1} parent=1 // pred_fallthru
      _
    // Predicated region
    $region34: #{tpu_custom_call.1} parent=1 // pred_check
      _
    $region35: #{tpu_custom_call.1} parent=1 // pred_check_branch
      %81 = sbr.rel (0) target = $region37
    $region36: #{tpu_custom_call.1} parent=1 // pred_region
      %83 = dma.done [#allocation6], 384
    $region37: #{tpu_custom_call.1} parent=1 // pred_fallthru
      _
    // Predicated region
    $region38: #{tpu_custom_call.1} parent=1 // pred_check
      _
    $region39: #{tpu_custom_call.1} parent=1 // pred_check_branch
      %85 = sbr.rel (0) target = $region41
    $region40: #{tpu_custom_call.1} parent=1 // pred_region
      %87 = dma.done [#allocation9], 256
    $region41: #{tpu_custom_call.1} parent=1 // pred_fallthru
      _
    %v88 = vld [vmem:[#allocation5] sm:$0xf]
    %v89 = vld [vmem:[#allocation5 + $0x4] sm:$0xf]
    %v90 = vld [vmem:[#allocation5 + $0x8] sm:$0xf]
    %v91 = vld [vmem:[#allocation5 + $0xc] sm:$0xf]
    %v92 = vld [vmem:[#allocation5 + $0x10] sm:$0xf]
    %v93 = vld [vmem:[#allocation5 + $0x14] sm:$0xf]
    %v94 = vld [vmem:[#allocation5 + $0x18] sm:$0xf]
    %v95 = vld [vmem:[#allocation5 + $0x1c] sm:$0xf]
    %v96 = vld [vmem:[#allocation5 + $0x20] sm:$0xf]
    %v97 = vld [vmem:[#allocation5 + $0x24] sm:$0xf]
    %v98 = vld [vmem:[#allocation5 + $0x28] sm:$0xf]
    %v99 = vld [vmem:[#allocation5 + $0x2c] sm:$0xf]
    %v100 = vld [vmem:[#allocation5 + $0x30] sm:$0xf]
    %v101 = vld [vmem:[#allocation5 + $0x34] sm:$0xf]
    %v102 = vld [vmem:[#allocation5 + $0x38] sm:$0xf]
    %v103 = vld [vmem:[#allocation5 + $0x3c] sm:$0xf]
    %v104 = vld [vmem:[%s2] sm:$0x1]
    %v105 = vld [vmem:[%s3] sm:$0x1]
    %v106 = vld [vmem:[#allocation2] sm:$0xff]
    %v107 = vld [vmem:[#allocation7] sm:$0xff]
    %vm108 = vcmp.lt.f32.partialorder %v107, %v106
    %v109 = vsel %vm108, 1, 0
    %v110 = vcvt.s32.f32 %v109
    %v111 = vpack.c.bf16 %v110, %v110
    %v113 = vperm.slane %v105, 0
    %v131 = vunpack.c.l.b16 %v88
    %v132 = vunpack.c.l.b16 %v89
    %v133 = vunpack.c.l.b16 %v90
    %v134 = vunpack.c.l.b16 %v91
    %v135 = vunpack.c.l.b16 %v92
    %v136 = vunpack.c.l.b16 %v93
    %v137 = vunpack.c.l.b16 %v94
    %v138 = vunpack.c.l.b16 %v95
    %v139 = vunpack.c.l.b16 %v96
    %v140 = vunpack.c.l.b16 %v97
    %v141 = vunpack.c.l.b16 %v98
    %v142 = vunpack.c.l.b16 %v99
    %v143 = vunpack.c.l.b16 %v100
    %v144 = vunpack.c.l.b16 %v101
    %v145 = vunpack.c.l.b16 %v102
    %v146 = vunpack.c.l.b16 %v103
    %v147 = vpack.c.b16 %v132, %v131
    %v148 = vpack.c.b16 %v134, %v133
    %v149 = vpack.c.b16 %v136, %v135
    %v150 = vpack.c.b16 %v138, %v137
    %v151 = vpack.c.b16 %v140, %v139
    %v152 = vpack.c.b16 %v142, %v141
    %v153 = vpack.c.b16 %v144, %v143
    %v154 = vpack.c.b16 %v146, %v145
    %163 = vmatpush.bf16.xpose.msra.mxu0 %v154
    %164 = vmatpush.bf16.xpose.msra.mxu0 %v153
    %165 = vmatpush.bf16.xpose.msra.mxu0 %v152
    %166 = vmatpush.bf16.xpose.msra.mxu0 %v151
    %167 = vmatpush.bf16.xpose.msra.mxu0 %v150
    %168 = vmatpush.bf16.xpose.msra.mxu0 %v149
    %169 = vmatpush.bf16.xpose.msra.mxu0 %v148
    %170 = vmatpush.bf16.xpose.msra.mxu0 %v147
    %171 = vmatmul.bf16.gmra.mxu0 %v111
    %v172 = vpop.f32.mrf.mxu0
    %v173 = vadd.f32 %v113, %v172
    %v174 = vpop.f32.mrf.mxu0
    %175 = vdwg.mxu0
    %v176 = vxor.u32 %v173, 2147483648
    %v177 = vmul.f32 %v176, 1.442695
    %v178 = vpow.pop %v177
    %v179 = vadd.f32 %v178, 1.0
    %v180 = vrcp.pop %v179
    %v181 = vmul.f32 %v179, %v180
    %v182 = vsub.f32 1.0, %v181
    %v183 = vmul.f32 %v180, %v182
    %v184 = vadd.f32 %v180, %v183
    %vm185 = vweird.f32 %v179
    %vm186 = vweird.f32 %v180
    %vm187 = vmor %vm185, %vm186
    %v188 = vsel %vm187, %v180, %v184
    %v189 = vand.u32 2147483647, %v179
    %vm190 = vcmp.eq.f32.partialorder %v189, 8.507059e+37
    %v191 = vand.u32 %v179, 2147483648
    %v192 = vor.u32 1.1754944e-38, %v191
    %v193 = vsel %vm190, %v192, %v188
    %v194 = vmul.f32 1.0, %v193
    %v195 = vld [vmem:[#allocation8] sm:$0xff]
    %vm196 = vcmp.lt.f32.partialorder %v195, %v194
    %v197 = vsel %vm196, 1, 0
    %v198 = vcvt.s32.f32 %v197
    %v199 = vpack.c.bf16 %v198, %v198
    %v201 = vperm.slane %v104, 0
    %203 = vmatpush.bf16.msra.mxu0 %v154
    %204 = vmatpush.bf16.msra.mxu0 %v153
    %205 = vmatpush.bf16.msra.mxu0 %v152
    %206 = vmatpush.bf16.msra.mxu0 %v151
    %207 = vmatpush.bf16.msra.mxu0 %v150
    %208 = vmatpush.bf16.msra.mxu0 %v149
    %209 = vmatpush.bf16.msra.mxu0 %v148
    %210 = vmatpush.bf16.msra.mxu0 %v147
    %211 = vmatmul.bf16.gmra.mxu0 %v199
    %v212 = vpop.f32.mrf.mxu0
    %v213 = vadd.f32 %v201, %v212
    %v214 = vpop.f32.mrf.mxu0
    %215 = vdwg.mxu0
    %v216 = vxor.u32 %v213, 2147483648
    %v217 = vmul.f32 %v216, 1.442695
    %v218 = vpow.pop %v217
    %v219 = vadd.f32 %v218, 1.0
    %v220 = vrcp.pop %v219
    %v221 = vmul.f32 %v219, %v220
    %v222 = vsub.f32 1.0, %v221
    %v223 = vmul.f32 %v220, %v222
    %v224 = vadd.f32 %v220, %v223
    %vm225 = vweird.f32 %v219
    %vm226 = vweird.f32 %v220
    %vm227 = vmor %vm225, %vm226
    %v228 = vsel %vm227, %v220, %v224
    %v229 = vand.u32 2147483647, %v219
    %vm230 = vcmp.eq.f32.partialorder %v229, 8.507059e+37
    %v231 = vand.u32 %v219, 2147483648
    %v232 = vor.u32 1.1754944e-38, %v231
    %v233 = vsel %vm230, %v232, %v228
    %v234 = vmul.f32 1.0, %v233
    %s235 = scalar_lea.vmem [#allocation7], 8
    %v236 = vld [vmem:[%s235] sm:$0xff]
    %vm237 = vcmp.lt.f32.partialorder %v236, %v234
    %v238 = vsel %vm237, 1, 0
    %v239 = vcvt.s32.f32 %v238
    %v240 = vpack.c.bf16 %v239, %v239
    %241 = vmatpush.bf16.xpose.msra.mxu0 %v154
    %242 = vmatpush.bf16.xpose.msra.mxu0 %v153
    %243 = vmatpush.bf16.xpose.msra.mxu0 %v152
    %244 = vmatpush.bf16.xpose.msra.mxu0 %v151
    %245 = vmatpush.bf16.xpose.msra.mxu0 %v150
    %246 = vmatpush.bf16.xpose.msra.mxu0 %v149
    %247 = vmatpush.bf16.xpose.msra.mxu0 %v148
    %248 = vmatpush.bf16.xpose.msra.mxu0 %v147
    %249 = vmatmul.bf16.gmra.mxu0 %v240
    %v250 = vpop.f32.mrf.mxu0
    %v251 = vadd.f32 %v113, %v250
    %v252 = vpop.f32.mrf.mxu0
    %253 = vdwg.mxu0
    %v254 = vxor.u32 %v251, 2147483648
    %v255 = vmul.f32 %v254, 1.442695
    %v256 = vpow.pop %v255
    %v257 = vadd.f32 %v256, 1.0
    %v258 = vrcp.pop %v257
    %v259 = vmul.f32 %v257, %v258
    %v260 = vsub.f32 1.0, %v259
    %v261 = vmul.f32 %v258, %v260
    %v262 = vadd.f32 %v258, %v261
    %vm263 = vweird.f32 %v257
    %vm264 = vweird.f32 %v258
    %vm265 = vmor %vm263, %vm264
    %v266 = vsel %vm265, %v258, %v262
    %v267 = vand.u32 2147483647, %v257
    %vm268 = vcmp.eq.f32.partialorder %v267, 8.507059e+37
    %v269 = vand.u32 %v257, 2147483648
    %v270 = vor.u32 1.1754944e-38, %v269
    %v271 = vsel %vm268, %v270, %v266
    %v272 = vmul.f32 1.0, %v271
    %s273 = scalar_lea.vmem [#allocation8], 8
    %v274 = vld [vmem:[%s273] sm:$0xff]
    %vm275 = vcmp.lt.f32.partialorder %v274, %v272
    %v276 = vsel %vm275, 1, 0
    %v277 = vcvt.s32.f32 %v276
    %v278 = vpack.c.bf16 %v277, %v277
    %279 = vmatpush.bf16.msra.mxu0 %v154
    %280 = vmatpush.bf16.msra.mxu0 %v153
    %281 = vmatpush.bf16.msra.mxu0 %v152
    %282 = vmatpush.bf16.msra.mxu0 %v151
    %283 = vmatpush.bf16.msra.mxu0 %v150
    %284 = vmatpush.bf16.msra.mxu0 %v149
    %285 = vmatpush.bf16.msra.mxu0 %v148
    %286 = vmatpush.bf16.msra.mxu0 %v147
    %287 = vmatmul.bf16.gmra.mxu0 %v278
    %v288 = vpop.f32.mrf.mxu0
    %v289 = vadd.f32 %v201, %v288
    %v290 = vpop.f32.mrf.mxu0
    %291 = vdwg.mxu0
    %v292 = vxor.u32 %v289, 2147483648
    %v293 = vmul.f32 %v292, 1.442695
    %v294 = vpow.pop %v293
    %v295 = vadd.f32 %v294, 1.0
    %v296 = vrcp.pop %v295
    %v297 = vmul.f32 %v295, %v296
    %v298 = vsub.f32 1.0, %v297
    %v299 = vmul.f32 %v296, %v298
    %v300 = vadd.f32 %v296, %v299
    %vm301 = vweird.f32 %v295
    %vm302 = vweird.f32 %v296
    %vm303 = vmor %vm301, %vm302
    %v304 = vsel %vm303, %v296, %v300
    %v305 = vand.u32 2147483647, %v295
    %vm306 = vcmp.eq.f32.partialorder %v305, 8.507059e+37
    %v307 = vand.u32 %v295, 2147483648
    %v308 = vor.u32 1.1754944e-38, %v307
    %v309 = vsel %vm306, %v308, %v304
    %v310 = vmul.f32 1.0, %v309
    %s311 = scalar_lea.vmem [#allocation7], 16
    %v312 = vld [vmem:[%s311] sm:$0xff]
    %vm313 = vcmp.lt.f32.partialorder %v312, %v310
    %v314 = vsel %vm313, 1, 0
    %v315 = vcvt.s32.f32 %v314
    %v316 = vpack.c.bf16 %v315, %v315
    %317 = vmatpush.bf16.xpose.msra.mxu0 %v154
    %318 = vmatpush.bf16.xpose.msra.mxu0 %v153
    %319 = vmatpush.bf16.xpose.msra.mxu0 %v152
    %320 = vmatpush.bf16.xpose.msra.mxu0 %v151
    %321 = vmatpush.bf16.xpose.msra.mxu0 %v150
    %322 = vmatpush.bf16.xpose.msra.mxu0 %v149
    %323 = vmatpush.bf16.xpose.msra.mxu0 %v148
    %324 = vmatpush.bf16.xpose.msra.mxu0 %v147
    %325 = vmatmul.bf16.gmra.mxu0 %v316
    %v326 = vpop.f32.mrf.mxu0
    %v327 = vadd.f32 %v113, %v326
    %v328 = vpop.f32.mrf.mxu0
    %329 = vdwg.mxu0
    %v330 = vxor.u32 %v327, 2147483648
    %v331 = vmul.f32 %v330, 1.442695
    %v332 = vpow.pop %v331
    %v333 = vadd.f32 %v332, 1.0
    %v334 = vrcp.pop %v333
    %v335 = vmul.f32 %v333, %v334
    %v336 = vsub.f32 1.0, %v335
    %v337 = vmul.f32 %v334, %v336
    %v338 = vadd.f32 %v334, %v337
    %vm339 = vweird.f32 %v333
    %vm340 = vweird.f32 %v334
    %vm341 = vmor %vm339, %vm340
    %v342 = vsel %vm341, %v334, %v338
    %v343 = vand.u32 2147483647, %v333
    %vm344 = vcmp.eq.f32.partialorder %v343, 8.507059e+37
    %v345 = vand.u32 %v333, 2147483648
    %v346 = vor.u32 1.1754944e-38, %v345
    %v347 = vsel %vm344, %v346, %v342
    %v348 = vmul.f32 1.0, %v347
    %349 = vst [vmem:[#allocation10] sm:$0xff] %v310
    %350 = vst [vmem:[#allocation11] sm:$0xff] %v348
    // Predicated region
    $region42: #{tpu_custom_call.1} parent=1 // pred_check
      _
    $region43: #{tpu_custom_call.1} parent=1 // pred_check_branch
      %352 = sbr.rel (0) target = $region45
    $region44: #{tpu_custom_call.1} parent=1 // pred_region
      %354 = vsyncadd [#allocation4], 0
      %s356 = sshll.u32 [#allocation10], 4
      %s357 = int_to_ptr.vmem [resolvable:$true] %s356
      %s358 = sshll.u32 %s6, 4
      %s359 = int_to_ptr.hbm [resolvable:$true] %s358
      %361 = dma.vmem_to_hbm [thread:$0]  %s357, 128, %s359, [#allocation4]
    $region45: #{tpu_custom_call.1} parent=1 // pred_fallthru
      _
    // Predicated region
    $region46: #{tpu_custom_call.1} parent=1 // pred_check
      _
    $region47: #{tpu_custom_call.1} parent=1 // pred_check_branch
      %363 = sbr.rel (0) target = $region49
    $region48: #{tpu_custom_call.1} parent=1 // pred_region
      %365 = vsyncadd [#allocation12], 0
      %s367 = sshll.u32 [#allocation11], 4
      %s368 = int_to_ptr.vmem [resolvable:$true] %s367
      %s369 = sshll.u32 %s7, 4
      %s370 = int_to_ptr.hbm [resolvable:$true] %s369
      %372 = dma.vmem_to_hbm [thread:$0]  %s368, 128, %s370, [#allocation12]
    $region49: #{tpu_custom_call.1} parent=1 // pred_fallthru
      _
    // Predicated region
    $region50: #{tpu_custom_call.1} parent=1 // pred_check
      _
    $region51: #{tpu_custom_call.1} parent=1 // pred_check_branch
      %374 = sbr.rel (0) target = $region53
    $region52: #{tpu_custom_call.1} parent=1 // pred_region
      %376 = dma.done [#allocation4], 128
    $region53: #{tpu_custom_call.1} parent=1 // pred_fallthru
      _
    // Predicated region
    $region54: #{tpu_custom_call.1} parent=1 // pred_check
      _
    $region55: #{tpu_custom_call.1} parent=1 // pred_check_branch
      %378 = sbr.rel (0) target = $region57
    $region56: #{tpu_custom_call.1} parent=1 // pred_region
      %380 = dma.done [#allocation12], 128
    $region57: #{tpu_custom_call.1} parent=1 // pred_fallthru
      _
    %381 = vsyncpa [#allocation3], 1
    %382 = vsyncpa [#allocation6], 1
    %383 = vsyncpa [#allocation9], 1
    %384 = vsyncpa [#allocation4], 1
    %385 = vsyncpa [#allocation12], 1

</llo_original>
